<compile_context>
chip_gen: v7x
topology: tpu7x:2x2x1
jax: 0.10.0
libtpu: 0.0.40
codegen_flags: <defaults>
</compile_context>

<pallas_src>
import jax
import jax.numpy as jnp
from jax.experimental import pallas as pl
from jax.experimental.pallas import tpu as pltpu


def _attn_classify_kernel(sim_ref, y_ref, out_ref):
    # sim_ref: [N, TB]; y_ref: [N, C, TB]; out_ref: [C, TB]   (lanes = batch tile TB)
    s = sim_ref[...].astype(jnp.float32)                      # [N, TB]
    m = jnp.max(s, axis=0, keepdims=True)                     # [1, TB] per-lane max over support
    e = jnp.exp(s - m)                                        # [N, TB] unnormalized softmax
    denom = jnp.sum(e, axis=0, keepdims=True)                 # [1, TB]

    y = y_ref[...].astype(jnp.float32)                        # [N, C, TB]  (matches ssp_y.float())
    # VPU multiply + leading-axis reduce (plain vreg adds); no MXU for the M=1 contraction.
    acc = jnp.sum(e[:, None, :] * y, axis=0)                  # [C, TB]

    # Deferred normalization: only TB divides; exact (approx=False) so rows sum to 1 exactly.
    inv = pl.reciprocal(denom, approx=False)                  # [1, TB]
    out_ref[...] = (acc * inv).astype(out_ref.dtype)


def _round_up(x, m):
    return ((x + m - 1) // m) * m


def _sublane_multiple(dtype):
    # Sub-32-bit dtypes pack along sublanes: 8 (32-bit), 16 (16-bit), 32 (8-bit).
    return 8 * max(1, 4 // jnp.dtype(dtype).itemsize)


def _vmem_budget():
    """Generation-aware (budget, vmem_limit) in bytes."""
    try:
        cap = pltpu.get_tpu_info().vmem_capacity_bytes
    except Exception:
        cap = 64 << 20                       # be conservative if the query is unavailable
    if cap <= (64 << 20):                    # v7x-class: 64 MiB physical per TC
        return 26 << 20, 32 << 20
    return 52 << 20, 64 << 20                # v5e / v6e: 128 MiB physical


def _pick_batch_tile(B, N, C, sim_dtype, y_dtype):
    """Largest lane tile (multiple of 128, or full B) fitting a padding-aware VMEM budget,
    capped so B > 128 always yields >= 2 grid steps (megacore sharding + pipelining)."""
    budget, vmem_limit = _vmem_budget()
    s_isz = jnp.dtype(sim_dtype).itemsize
    y_isz = jnp.dtype(y_dtype).itemsize

    def footprint(tb):
        lp = _round_up(tb, 128)                                        # lane padding
        sim_t = _round_up(N, _sublane_multiple(sim_dtype)) * lp * s_isz
        y_t = N * _round_up(C, _sublane_multiple(y_dtype)) * lp * y_isz
        out_t = _round_up(C, 8) * lp * 4
        io = 2 * (sim_t + y_t + out_t)                                 # double-buffered streams
        f32_tmp = (_round_up(N, 8) * lp * 4                            # e
                   + 2 * N * _round_up(C, 8) * lp * 4                  # y cast + product
                   + 2 * _round_up(C, 8) * lp * 4)                     # acc + normalized out
        return io + f32_tmp

    if B <= 128:
        # Lane-dim blocks must be a multiple of 128 or the full extent; full B is the only
        # legal choice here (grid of 1 step).
        return B, vmem_limit

    tb = 128
    while (tb + 128) < B and footprint(tb + 128) <= budget:
        tb += 128
    # Guarantee >= 2 grid steps so the "parallel" batch axis can shard across TensorCores.
    two_step_cap = max(128, _round_up(-(-B // 2), 128))
    tb = min(tb, two_step_cap)
    return tb, vmem_limit


def attentional_classify(similarities: jax.Array, ssp_y: jax.Array,
                         squeeze: bool = True) -> jax.Array:
    """similarities: [B, N]; ssp_y: [B, N, C] (any dtype; cast to float in-kernel).

    Returns softmax(similarities, axis=1) contracted with ssp_y -> [B, C]
    (size-1 dims dropped if squeeze=True, matching PyTorch's .squeeze()).
    """
    B, N = similarities.shape
    _, _, C = ssp_y.shape
    tb, vmem_limit = _pick_batch_tile(B, N, C, similarities.dtype, ssp_y.dtype)

    # Layout plumbing (wrapper-side): put the batch dim on the 128-lane axis for every operand
    # so vregs, VPU ops, and the output store are lane-dense even when C is tiny.
    sim_t = similarities.T                         # [N, B]
    y_t = jnp.transpose(ssp_y, (1, 2, 0))          # [N, C, B]

    # Note: when B % tb != 0 the padded tail lanes of the last block compute exp() on
    # unspecified data; reductions are per-lane, so valid lanes are unaffected and the
    # padded lanes are dropped on writeback.
    out_t = pl.pallas_call(
        _attn_classify_kernel,
        out_shape=jax.ShapeDtypeStruct((C, B), jnp.float32),
        grid=(pl.cdiv(B, tb),),
        in_specs=[
            pl.BlockSpec((N, tb), lambda i: (0, i)),
            pl.BlockSpec((N, C, tb), lambda i: (0, 0, i)),
        ],
        out_specs=pl.BlockSpec((C, tb), lambda i: (0, i)),
        compiler_params=pltpu.CompilerParams(
            dimension_semantics=("parallel",),
            vmem_limit_bytes=vmem_limit,
        ),
    )(sim_t, y_t)

    out = out_t.T                                  # [B, C]
    if squeeze:
        # PyTorch .squeeze() drops all size-1 dims of the [B, 1, C] bmm result.
        sq_shape = tuple(d for d in (B, C) if d != 1)
        out = out.reshape(sq_shape)
    return out


def _reference(similarities, ssp_y):
    p = jax.nn.softmax(similarities.astype(jnp.float32), axis=1)        # [B, N]
    return jnp.einsum("bn,bnc->bc", p, ssp_y.astype(jnp.float32))       # [B, C]


if __name__ == "__main__":
    # Small shapes: batch=2, support-set size N=8, num_classes C=5.
    B, N, C = 2, 8, 5
    key = jax.random.PRNGKey(0)
    k_sim, k_lbl = jax.random.split(key)

    similarities = jax.random.normal(k_sim, (B, N), dtype=jnp.float32)
    labels = jax.random.randint(k_lbl, (B, N), 0, C)
    # int8 one-hot keeps the dominant HBM stream narrow; kernel casts to f32 (= ssp_y.float()).
    ssp_y = jax.nn.one_hot(labels, C, dtype=jnp.int8)                   # [B, N, C]

    preds = attentional_classify(similarities, ssp_y)
    preds = jax.block_until_ready(preds)

    ref = _reference(similarities, ssp_y)
    assert preds.shape == (B, C), preds.shape
    assert jnp.allclose(preds, ref, atol=1e-5, rtol=1e-5), (preds, ref)
    # Rows are exactly-normalized probabilities (softmax * one-hot), approx=False reciprocal.
    assert jnp.allclose(preds.sum(axis=-1), 1.0, atol=1e-5), preds.sum(axis=-1)
    print("KERNEL_OK")
</pallas_src>

<mosaic_0001>
module attributes {stable_mosaic.version = 11 : i64} {
  func.func @_attn_classify_kernel(%arg0: i32, %arg1: memref<8x2xf32, #tpu.memory_space<vmem>>, %arg2: memref<8x5x2xi8, #tpu.memory_space<vmem>>, %arg3: memref<5x2xf32, #tpu.memory_space<vmem>>) attributes {dimension_semantics = [#tpu.dimension_semantics<parallel>], iteration_bounds = array<i64: 1>, scalar_prefetch = 0 : i64, scratch_operands = 0 : i64, tpu.core_type = #tpu.core_type<tc>, window_params = [{transform_indices = @transform_0, window_bounds = array<i64: 8, 2>}, {transform_indices = @transform_1, window_bounds = array<i64: 8, 5, 2>}, {transform_indices = @transform_2, window_bounds = array<i64: 5, 2>}]} {
    %c0 = arith.constant 0 : index
    %c0_0 = arith.constant 0 : index
    %0 = vector.load %arg1[%c0, %c0_0] : memref<8x2xf32, #tpu.memory_space<vmem>>, vector<8x2xf32>
    %cst = arith.constant dense<0xFF800000> : vector<2xf32>
    %1 = vector.multi_reduction <maximumf>, %0, %cst [0] : vector<8x2xf32> to vector<2xf32>
    %2 = vector.shape_cast %1 : vector<2xf32> to vector<1x2xf32>
    %3 = vector.broadcast %2 : vector<1x2xf32> to vector<8x2xf32>
    %4 = arith.subf %0, %3 : vector<8x2xf32>
    %5 = math.exp %4 : vector<8x2xf32>
    %cst_1 = arith.constant dense<0.000000e+00> : vector<2xf32>
    %6 = vector.multi_reduction <add>, %5, %cst_1 [0] : vector<8x2xf32> to vector<2xf32>
    %7 = vector.shape_cast %6 : vector<2xf32> to vector<1x2xf32>
    %c0_2 = arith.constant 0 : index
    %c0_3 = arith.constant 0 : index
    %c0_4 = arith.constant 0 : index
    %8 = vector.load %arg2[%c0_2, %c0_3, %c0_4] : memref<8x5x2xi8, #tpu.memory_space<vmem>>, vector<8x5x2xi8>
    %9 = arith.sitofp %8 : vector<8x5x2xi8> to vector<8x5x2xf32>
    %10 = vector.shape_cast %5 : vector<8x2xf32> to vector<8x1x2xf32>
    %11 = vector.broadcast %10 : vector<8x1x2xf32> to vector<8x5x2xf32>
    %12 = arith.mulf %11, %9 : vector<8x5x2xf32>
    %cst_5 = arith.constant dense<0.000000e+00> : vector<5x2xf32>
    %13 = vector.multi_reduction <add>, %12, %cst_5 [0] : vector<8x5x2xf32> to vector<5x2xf32>
    %14 = tpu.reciprocal %7 : vector<1x2xf32> -> vector<1x2xf32>
    %15 = vector.broadcast %14 : vector<1x2xf32> to vector<5x2xf32>
    %16 = arith.mulf %13, %15 : vector<5x2xf32>
    %c0_6 = arith.constant 0 : index
    %c0_7 = arith.constant 0 : index
    %17 = vector.load %arg3[%c0_6, %c0_7] : memref<5x2xf32, #tpu.memory_space<vmem>>, vector<5x2xf32>
    tpu.vector_store %arg3[%c0_6, %c0_7], %16 {strides = array<i32>} : memref<5x2xf32, #tpu.memory_space<vmem>>, vector<5x2xf32>,
    return
  }
  func.func @transform_0(%arg0: i32) -> (i32, i32) {
    %c0_i32 = arith.constant 0 : i32
    %c0_i32_0 = arith.constant 0 : i32
    return %c0_i32, %arg0 : i32, i32
  }
  func.func @transform_1(%arg0: i32) -> (i32, i32, i32) {
    %c0_i32 = arith.constant 0 : i32
    %c0_i32_0 = arith.constant 0 : i32
    %c0_i32_1 = arith.constant 0 : i32
    return %c0_i32, %c0_i32_0, %arg0 : i32, i32, i32
  }
  func.func @transform_2(%arg0: i32) -> (i32, i32) {
    %c0_i32 = arith.constant 0 : i32
    %c0_i32_0 = arith.constant 0 : i32
    return %c0_i32, %arg0 : i32, i32
  }
}

</mosaic_0001>

<llo_original>
// kernel: tpu_custom_call.1
$region0: #{tpu_custom_call.1}
  #allocation0 [shape = 'u32[]', space=smem, size = 0x4, offset = 0x4, fixed_abs, tag = 'smem constant byte address 0x4 - core index']
  #allocation1 [shape = 'u32[144,128]{1,0:T(1,128)}', space=vmem, size = 0x12000, scoped, tag = 'internal scratch']
  %s0 = inlined_call_operand.vmem [shape: f32[8,2], index: 0, kind: input, shape index: {}]
  %s1 = inlined_call_operand.vmem [shape: s8[8,5,2], index: 1, kind: input, shape index: {}]
  %s2 = inlined_call_operand.vmem [shape: f32[5,2], index: 2, kind: output, shape index: {}]
  %s3 = sld [smem:[#allocation0]]
  $region18: #{tpu_custom_call.1} parent=0
    _
  %s5 = ssub.s32 1, %s3
  %s6 = scalar_select 0, %s5, %s3
  // Predicated region
  $region2: #{tpu_custom_call.1} parent=0 // pred_check
    _
  $region3: #{tpu_custom_call.1} parent=0 // pred_check_branch
    %8 = sbr.rel (0) target = $region5
  $region4: #{tpu_custom_call.1} parent=0 // pred_region
    _
  $region5: #{tpu_custom_call.1} parent=0 // pred_fallthru
    _
  // Predicated region
  $region6: #{tpu_custom_call.1} parent=0 // pred_check
    _
  $region7: #{tpu_custom_call.1} parent=0 // pred_check_branch
    %10 = sbr.rel (0) target = $region9
  $region8: #{tpu_custom_call.1} parent=0 // pred_region
    _
  $region9: #{tpu_custom_call.1} parent=0 // pred_fallthru
    _
  %v11 = vld [vmem:[%s0] sm:$0xff]
  %vm12 = vcmask 15360
  %v13 = vsel %vm12, %v11, -inf
  %v14 = vrot.slane %v13, 4
  %v15 = vmax.f32 %v13, %v14
  %v16 = vrot.slane %v15, 2
  %v17 = vmax.f32 %v15, %v16
  %v18 = vrot.slane %v17, 1
  %v19 = vmax.f32 %v17, %v18
  %v20 = vsub.f32 %v11, %v19
  %v21 = vmul.f32 %v20, 1.442695
  %v22 = vpow.pop %v21
  %v23 = vsel %vm12, %v22, 0.0
  %v24 = vrot.slane %v23, 4
  %v25 = vadd.f32 %v23, %v24
  %v26 = vrot.slane %v25, 2
  %v27 = vadd.f32 %v25, %v26
  %v28 = vrot.slane %v27, 1
  %v29 = vadd.f32 %v27, %v28
  %v30 = vld [vmem:[%s1] sm:$0x3]
  %v31 = vld [vmem:[%s1 + $0x2] sm:$0x3]
  %v32 = vld [vmem:[%s1 + $0x4] sm:$0x3]
  %v33 = vld [vmem:[%s1 + $0x6] sm:$0x3]
  %v34 = vld [vmem:[%s1 + $0x8] sm:$0x3]
  %v35 = vld [vmem:[%s1 + $0xa] sm:$0x3]
  %v36 = vld [vmem:[%s1 + $0xc] sm:$0x3]
  %v37 = vld [vmem:[%s1 + $0xe] sm:$0x3]
  %v38 = vunpack.c.0.s8 %v30
  %v39 = vunpack.c.0.s8 %v31
  %v40 = vunpack.c.0.s8 %v32
  %v41 = vunpack.c.0.s8 %v33
  %v42 = vunpack.c.0.s8 %v34
  %v43 = vunpack.c.0.s8 %v35
  %v44 = vunpack.c.0.s8 %v36
  %v45 = vunpack.c.0.s8 %v37
  %v46 = vcvt.s32.f32 %v38
  %v47 = vcvt.s32.f32 %v39
  %v48 = vcvt.s32.f32 %v40
  %v49 = vcvt.s32.f32 %v41
  %v50 = vcvt.s32.f32 %v42
  %v51 = vcvt.s32.f32 %v43
  %v52 = vcvt.s32.f32 %v44
  %v53 = vcvt.s32.f32 %v45
  %v55 = vcombine.high %v22, %v22
  %v57 = vunpack.c.l.s4 1966171168
  %v58 = vunpack.c.0.s8 %v57
  %v59 = vlaneseq
  %v60 = vshrl.u32 %v59, 7
  %v61 = vsub.s32 %v58, %v60
  %v62 = vrot.slane %v22, %v61
  %v64 = vunpack.c.l.s4 1966171168
  %v65 = vunpack.c.0.s8 %v64
  %v66 = vlaneseq
  %v67 = vshrl.u32 %v66, 7
  %v68 = vsub.s32 %v65, %v67
  %v69 = vrot.slane %v55, %v68
  %v70 = vcombine.high %v62, %v62
  %v71 = vcombine.high %v69, %v69
  %v73 = vunpack.c.l.s4 1966171168
  %v74 = vunpack.c.0.s8 %v73
  %v75 = vlaneseq
  %v76 = vshrl.u32 %v75, 7
  %v77 = vsub.s32 %v74, %v76
  %v78 = vrot.slane %v62, %v77
  %v80 = vunpack.c.l.s4 1966171168
  %v81 = vunpack.c.0.s8 %v80
  %v82 = vlaneseq
  %v83 = vshrl.u32 %v82, 7
  %v84 = vsub.s32 %v81, %v83
  %v85 = vrot.slane %v69, %v84
  %v87 = vunpack.c.l.s4 1966171168
  %v88 = vunpack.c.0.s8 %v87
  %v89 = vlaneseq
  %v90 = vshrl.u32 %v89, 7
  %v91 = vsub.s32 %v88, %v90
  %v92 = vrot.slane %v70, %v91
  %v94 = vunpack.c.l.s4 1966171168
  %v95 = vunpack.c.0.s8 %v94
  %v96 = vlaneseq
  %v97 = vshrl.u32 %v96, 7
  %v98 = vsub.s32 %v95, %v97
  %v99 = vrot.slane %v71, %v98
  %v100 = vcombine.high %v78, %v78
  %v101 = vcombine.high %v85, %v85
  %v102 = vcombine.high %v92, %v92
  %v103 = vcombine.high %v99, %v99
  %v104 = vlaneseq
  %v105 = vshrl.u32 %v104, 7
  %v106 = vsub.s32 0, %v105
  %v107 = vrot.slane %v78, %v106
  %v108 = vlaneseq
  %v109 = vshrl.u32 %v108, 7
  %v110 = vsub.s32 0, %v109
  %v111 = vrot.slane %v92, %v110
  %v112 = vlaneseq
  %v113 = vshrl.u32 %v112, 7
  %v114 = vsub.s32 0, %v113
  %v115 = vrot.slane %v100, %v114
  %v116 = vlaneseq
  %v117 = vshrl.u32 %v116, 7
  %v118 = vsub.s32 0, %v117
  %v119 = vrot.slane %v102, %v118
  %v120 = vlaneseq
  %v121 = vshrl.u32 %v120, 7
  %v122 = vsub.s32 0, %v121
  %v123 = vrot.slane %v85, %v122
  %v124 = vlaneseq
  %v125 = vshrl.u32 %v124, 7
  %v126 = vsub.s32 0, %v125
  %v127 = vrot.slane %v99, %v126
  %v128 = vlaneseq
  %v129 = vshrl.u32 %v128, 7
  %v130 = vsub.s32 0, %v129
  %v131 = vrot.slane %v101, %v130
  %v132 = vlaneseq
  %v133 = vshrl.u32 %v132, 7
  %v134 = vsub.s32 0, %v133
  %v135 = vrot.slane %v103, %v134
  %v144 = vmul.f32 %v107, %v46
  %v145 = vmul.f32 %v111, %v47
  %v146 = vmul.f32 %v115, %v48
  %v147 = vmul.f32 %v119, %v49
  %v148 = vmul.f32 %v123, %v50
  %v149 = vmul.f32 %v127, %v51
  %v150 = vmul.f32 %v131, %v52
  %v151 = vmul.f32 %v135, %v53
  %vm152 = vcmask 12288
  %v153 = vsel %vm152, %v144, 0.0
  %v154 = vsel %vm152, %v145, 0.0
  %v155 = vadd.f32 %v153, %v154
  %v156 = vsel %vm152, %v146, 0.0
  %v157 = vadd.f32 %v155, %v156
  %v158 = vsel %vm152, %v147, 0.0
  %v159 = vadd.f32 %v157, %v158
  %v160 = vsel %vm152, %v148, 0.0
  %v161 = vadd.f32 %v159, %v160
  %v162 = vsel %vm152, %v149, 0.0
  %v163 = vadd.f32 %v161, %v162
  %v164 = vsel %vm152, %v150, 0.0
  %v165 = vadd.f32 %v163, %v164
  %v166 = vsel %vm152, %v151, 0.0
  %v167 = vadd.f32 %v165, %v166
  %v168 = vrcp.pop %v29
  %v169 = vmul.f32 %v167, %v168
  %170 = vst.msk [vmem:[%s2] sm:$0x1f] %vm152, %v169
  // Predicated region
  $region10: #{tpu_custom_call.1} parent=0 // pred_check
    _
  $region11: #{tpu_custom_call.1} parent=0 // pred_check_branch
    %172 = sbr.rel (0) target = $region13
  $region12: #{tpu_custom_call.1} parent=0 // pred_region
    _
  $region13: #{tpu_custom_call.1} parent=0 // pred_fallthru
    _
  // Predicated region
  $region14: #{tpu_custom_call.1} parent=0 // pred_check
    _
  $region15: #{tpu_custom_call.1} parent=0 // pred_check_branch
    %174 = sbr.rel (0) target = $region17
  $region16: #{tpu_custom_call.1} parent=0 // pred_region
    _
  $region17: #{tpu_custom_call.1} parent=0 // pred_fallthru
    _

</llo_original>
